<compile_context>
chip_gen: v6e
topology: v6e:2x2x1
jax: 0.10.0
libtpu: 0.0.40
codegen_flags: <defaults>
</compile_context>

<pallas_src>
import jax
import jax.numpy as jnp
from jax.experimental import pallas as pl
from jax.experimental.pallas import tpu as pltpu

K_IN = 28 * 28      # 784; streamed unpadded (block last dim == full array dim)
H_PAD = 128         # hidden widths (128, 64, 64) padded to full lane width
N_OUT = 10
N_PAD = 128         # lane-dense logits store; sliced back to 10 in the wrapper


def _cdiv(a, b):
    return -(-a // b)


def _round_up(x, m):
    return _cdiv(x, m) * m


def mlp_kernel(x_ref,
               w1_ref, b1_ref,
               w2_ref, b2_ref,
               w3_ref, b3_ref,
               w4_ref, b4_ref,
               o_ref):
    # x arrives as f32 straight from HBM; cast to bf16 in VMEM (VPU slack is
    # free -- this kernel is HBM-bandwidth-bound on the x stream).
    x = x_ref[...].astype(jnp.bfloat16)

    # layer 1: (TM, 784) bf16 @ (784, 128) bf16 -> f32 accum
    h = jnp.dot(x, w1_ref[...], preferred_element_type=jnp.float32)
    h = jnp.maximum(h + b1_ref[...], 0.0)

    # layers 2/3: padded to (128, 128); padded cols stay exact zeros (bias pad
    # is zero, ReLU(0)=0), so the math matches the unpadded module exactly.
    h = jnp.dot(h.astype(jnp.bfloat16), w2_ref[...],
                preferred_element_type=jnp.float32)
    h = jnp.maximum(h + b2_ref[...], 0.0)

    h = jnp.dot(h.astype(jnp.bfloat16), w3_ref[...],
                preferred_element_type=jnp.float32)
    h = jnp.maximum(h + b3_ref[...], 0.0)

    # layer 4 (logits, no ReLU): lane-dense (TM, 128) f32 store
    h = jnp.dot(h.astype(jnp.bfloat16), w4_ref[...],
                preferred_element_type=jnp.float32)
    o_ref[...] = h + b4_ref[...]


def prepare_params(params):
    """Cast weights to bf16; pad hidden/output widths to 128 lanes (w1 stays
    unpadded 784x128 since x is streamed with K=784)."""
    (w1, b1), (w2, b2), (w3, b3), (w4, b4) = params

    def padw(w, k, n):
        out = jnp.zeros((k, n), jnp.bfloat16)
        return out.at[:w.shape[0], :w.shape[1]].set(w.astype(jnp.bfloat16))

    def padb(b, n):
        out = jnp.zeros((1, n), jnp.float32)
        return out.at[:, :b.shape[1]].set(b.astype(jnp.float32))

    return (w1.astype(jnp.bfloat16), padb(b1, H_PAD),   # w1: (784, 128) unpadded
            padw(w2, H_PAD, H_PAD), padb(b2, H_PAD),
            padw(w3, H_PAD, H_PAD), padb(b3, H_PAD),
            padw(w4, H_PAD, N_PAD), padb(b4, N_PAD))


def _choose_tm(B, tm_max=512):
    """Batch-tile size: multiple of 8 (or the full batch for tiny B), close to
    tm_max, preferring exact divisors of B (zero padded rows) and >= 2 tiles
    so the batch axis can shard across TensorCores on v7x megacore."""
    if B <= 8:
        return B                          # single full-extent tile (always legal)
    min_tiles = 2 if B >= 16 else 1       # give both v7x cores work when possible
    n_tiles = max(min_tiles, _cdiv(B, tm_max))
    target = _round_up(_cdiv(B, n_tiles), 8)
    # Prefer a multiple-of-8 tile that divides B exactly -> no wasted rows.
    for cand in range(target, 7, -8):
        if B % cand == 0:
            return cand
    return target                         # ragged last tile (masked by Pallas)


def mnist_model_deep_forward(x, params, tm=512):
    """x: (B, 1, 28, 28) or anything reshapable to (-1, 784). Returns (B, 10)."""
    x2d = x.reshape(-1, K_IN).astype(jnp.float32)   # no pad / no host bf16 pass
    B = x2d.shape[0]

    TM = _choose_tm(B, tm)
    n_blocks = _cdiv(B, TM)

    pw = prepare_params(params)
    w1, b1, w2, b2, w3, b3, w4, b4 = pw

    def resident(arr):
        # Constant block index across the grid -> DMA'd once, stays in VMEM.
        nd = arr.ndim
        return pl.BlockSpec(arr.shape, lambda i, _nd=nd: (0,) * _nd)

    weight_bytes = sum(int(a.size) * a.dtype.itemsize for a in pw)
    rows = n_blocks * TM
    flops = 2 * rows * (K_IN * H_PAD + 2 * H_PAD * H_PAD + H_PAD * N_PAD)
    bytes_accessed = B * K_IN * 4 + weight_bytes + B * N_PAD * 4

    out = pl.pallas_call(
        mlp_kernel,
        out_shape=jax.ShapeDtypeStruct((B, N_PAD), jnp.float32),
        grid=(n_blocks,),
        in_specs=[
            # x tiles streamed (double-buffered); last dim == full array dim.
            pl.BlockSpec((TM, K_IN), lambda i: (i, 0)),
            resident(w1), resident(b1),
            resident(w2), resident(b2),
            resident(w3), resident(b3),
            resident(w4), resident(b4),
        ],
        out_specs=pl.BlockSpec((TM, N_PAD), lambda i: (i, 0)),
        compiler_params=pltpu.CompilerParams(
            dimension_semantics=("parallel",)),
        cost_estimate=pl.CostEstimate(
            flops=flops, transcendentals=0, bytes_accessed=bytes_accessed),
    )(x2d, w1, b1, w2, b2, w3, b3, w4, b4)

    # TODO(synk): for a fully fused consumer (softmax/argmax) the padded
    # (B, 128) block could be consumed directly / stored as bf16 to save the
    # final slice pass; kept f32 + slice here for exact API semantics.
    return out[:, :N_OUT]


def init_params(key):
    """PyTorch-style nn.Linear init; weights stored (in, out) so kernel does x@W."""
    dims = [(K_IN, 128), (128, 64), (64, 64), (64, N_OUT)]
    params = []
    for (din, dout) in dims:
        key, kw, kb = jax.random.split(key, 3)
        bound = 1.0 / jnp.sqrt(jnp.float32(din))
        w = jax.random.uniform(kw, (din, dout), jnp.float32, -bound, bound)
        b = jax.random.uniform(kb, (1, dout), jnp.float32, -bound, bound)
        params.append((w, b))
    return params


def reference_forward_f32(x, params):
    """Plain f32 reference matching the PyTorch module semantics."""
    h = x.reshape(-1, K_IN).astype(jnp.float32)
    (w1, b1), (w2, b2), (w3, b3), (w4, b4) = params
    h = jnp.maximum(h @ w1 + b1, 0.0)
    h = jnp.maximum(h @ w2 + b2, 0.0)
    h = jnp.maximum(h @ w3 + b3, 0.0)
    return h @ w4 + b4


def reference_forward_bf16(x, params):
    """Mirrors the kernel's bf16-operand / f32-accumulate math exactly."""
    (w1, b1), (w2, b2), (w3, b3), (w4, b4) = params

    def lin(a, w, b):
        return jnp.dot(a, w.astype(jnp.bfloat16),
                       preferred_element_type=jnp.float32) + b

    h = x.reshape(-1, K_IN).astype(jnp.bfloat16)
    h = jnp.maximum(lin(h, w1, b1), 0.0).astype(jnp.bfloat16)
    h = jnp.maximum(lin(h, w2, b2), 0.0).astype(jnp.bfloat16)
    h = jnp.maximum(lin(h, w3, b3), 0.0).astype(jnp.bfloat16)
    return lin(h, w4, b4)


if __name__ == "__main__":
    key = jax.random.PRNGKey(0)
    key, kx = jax.random.split(key)
    params = init_params(key)

    # Small MNIST-like batch: NCHW (B, 1, 28, 28)
    x = jax.random.normal(kx, (2, 1, 28, 28), dtype=jnp.float32)

    out = jax.block_until_ready(mnist_model_deep_forward(x, params))
    assert out.shape == (2, N_OUT), out.shape

    ref_bf16 = reference_forward_bf16(x, params)
    ref_f32 = reference_forward_f32(x, params)
    assert jnp.allclose(out, ref_bf16, atol=2e-3, rtol=2e-3), \
        "mismatch vs bf16 reference"
    assert jnp.allclose(out, ref_f32, atol=1e-1, rtol=1e-1), \
        "mismatch vs f32 reference"

    # Exercise the multi-tile batch grid (B=600 -> TM=200, 3 balanced tiles).
    key, kx2 = jax.random.split(key)
    x_big = jax.random.normal(kx2, (600, 1, 28, 28), dtype=jnp.float32)
    out_big = jax.block_until_ready(mnist_model_deep_forward(x_big, params))
    assert out_big.shape == (600, N_OUT), out_big.shape
    assert jnp.allclose(out_big, reference_forward_bf16(x_big, params),
                        atol=2e-3, rtol=2e-3), "mismatch (batched) vs reference"

    print("KERNEL_OK")
</pallas_src>

<mosaic_0001>
module attributes {stable_mosaic.version = 11 : i64} {
  func.func @mlp_kernel(%arg0: i32, %arg1: memref<2x784xf32, #tpu.memory_space<vmem>>, %arg2: memref<784x128xbf16, #tpu.memory_space<vmem>>, %arg3: memref<1x128xf32, #tpu.memory_space<vmem>>, %arg4: memref<128x128xbf16, #tpu.memory_space<vmem>>, %arg5: memref<1x128xf32, #tpu.memory_space<vmem>>, %arg6: memref<128x128xbf16, #tpu.memory_space<vmem>>, %arg7: memref<1x128xf32, #tpu.memory_space<vmem>>, %arg8: memref<128x128xbf16, #tpu.memory_space<vmem>>, %arg9: memref<1x128xf32, #tpu.memory_space<vmem>>, %arg10: memref<2x128xf32, #tpu.memory_space<vmem>>) attributes {dimension_semantics = [#tpu.dimension_semantics<parallel>], iteration_bounds = array<i64: 1>, scalar_prefetch = 0 : i64, scratch_operands = 0 : i64, tpu.core_type = #tpu.core_type<tc>, window_params = [{transform_indices = @transform_0, window_bounds = array<i64: 2, 784>}, {pipeline_mode = #tpu.pipeline_mode<synchronous>, transform_indices = @transform_1, window_bounds = array<i64: 784, 128>}, {pipeline_mode = #tpu.pipeline_mode<synchronous>, transform_indices = @transform_2, window_bounds = array<i64: 1, 128>}, {pipeline_mode = #tpu.pipeline_mode<synchronous>, transform_indices = @transform_3, window_bounds = array<i64: 128, 128>}, {pipeline_mode = #tpu.pipeline_mode<synchronous>, transform_indices = @transform_4, window_bounds = array<i64: 1, 128>}, {pipeline_mode = #tpu.pipeline_mode<synchronous>, transform_indices = @transform_5, window_bounds = array<i64: 128, 128>}, {pipeline_mode = #tpu.pipeline_mode<synchronous>, transform_indices = @transform_6, window_bounds = array<i64: 1, 128>}, {pipeline_mode = #tpu.pipeline_mode<synchronous>, transform_indices = @transform_7, window_bounds = array<i64: 128, 128>}, {pipeline_mode = #tpu.pipeline_mode<synchronous>, transform_indices = @transform_8, window_bounds = array<i64: 1, 128>}, {transform_indices = @transform_9, window_bounds = array<i64: 2, 128>}]} {
    %c0 = arith.constant 0 : index
    %c0_0 = arith.constant 0 : index
    %0 = vector.load %arg1[%c0, %c0_0] : memref<2x784xf32, #tpu.memory_space<vmem>>, vector<2x784xf32>
    %1 = arith.truncf %0 : vector<2x784xf32> to vector<2x784xbf16>
    %c0_1 = arith.constant 0 : index
    %c0_2 = arith.constant 0 : index
    %2 = vector.load %arg2[%c0_1, %c0_2] : memref<784x128xbf16, #tpu.memory_space<vmem>>, vector<784x128xbf16>
    %cst = arith.constant dense<0.000000e+00> : vector<2x128xf32>
    %3 = tpu.matmul %1, %2, %cst {dimension_numbers = #tpu.dot_dimension_numbers<[1], [0], [0], [1], [0, 0, 1, 1], [], []>} : vector<2x784xbf16>, vector<784x128xbf16>, vector<2x128xf32> -> vector<2x128xf32>
    %c0_3 = arith.constant 0 : index
    %c0_4 = arith.constant 0 : index
    %4 = vector.load %arg3[%c0_3, %c0_4] : memref<1x128xf32, #tpu.memory_space<vmem>>, vector<1x128xf32>
    %5 = vector.broadcast %4 : vector<1x128xf32> to vector<2x128xf32>
    %6 = arith.addf %3, %5 : vector<2x128xf32>
    %cst_5 = arith.constant 0.000000e+00 : f32
    %7 = vector.broadcast %cst_5 : f32 to vector<2x128xf32>
    %8 = arith.maximumf %6, %7 : vector<2x128xf32>
    %9 = arith.truncf %8 : vector<2x128xf32> to vector<2x128xbf16>
    %c0_6 = arith.constant 0 : index
    %c0_7 = arith.constant 0 : index
    %10 = vector.load %arg4[%c0_6, %c0_7] : memref<128x128xbf16, #tpu.memory_space<vmem>>, vector<128x128xbf16>
    %cst_8 = arith.constant dense<0.000000e+00> : vector<2x128xf32>
    %11 = tpu.matmul %9, %10, %cst_8 {dimension_numbers = #tpu.dot_dimension_numbers<[1], [0], [0], [1], [0, 0, 1, 1], [], []>} : vector<2x128xbf16>, vector<128x128xbf16>, vector<2x128xf32> -> vector<2x128xf32>
    %c0_9 = arith.constant 0 : index
    %c0_10 = arith.constant 0 : index
    %12 = vector.load %arg5[%c0_9, %c0_10] : memref<1x128xf32, #tpu.memory_space<vmem>>, vector<1x128xf32>
    %13 = vector.broadcast %12 : vector<1x128xf32> to vector<2x128xf32>
    %14 = arith.addf %11, %13 : vector<2x128xf32>
    %cst_11 = arith.constant 0.000000e+00 : f32
    %15 = vector.broadcast %cst_11 : f32 to vector<2x128xf32>
    %16 = arith.maximumf %14, %15 : vector<2x128xf32>
    %17 = arith.truncf %16 : vector<2x128xf32> to vector<2x128xbf16>
    %c0_12 = arith.constant 0 : index
    %c0_13 = arith.constant 0 : index
    %18 = vector.load %arg6[%c0_12, %c0_13] : memref<128x128xbf16, #tpu.memory_space<vmem>>, vector<128x128xbf16>
    %cst_14 = arith.constant dense<0.000000e+00> : vector<2x128xf32>
    %19 = tpu.matmul %17, %18, %cst_14 {dimension_numbers = #tpu.dot_dimension_numbers<[1], [0], [0], [1], [0, 0, 1, 1], [], []>} : vector<2x128xbf16>, vector<128x128xbf16>, vector<2x128xf32> -> vector<2x128xf32>
    %c0_15 = arith.constant 0 : index
    %c0_16 = arith.constant 0 : index
    %20 = vector.load %arg7[%c0_15, %c0_16] : memref<1x128xf32, #tpu.memory_space<vmem>>, vector<1x128xf32>
    %21 = vector.broadcast %20 : vector<1x128xf32> to vector<2x128xf32>
    %22 = arith.addf %19, %21 : vector<2x128xf32>
    %cst_17 = arith.constant 0.000000e+00 : f32
    %23 = vector.broadcast %cst_17 : f32 to vector<2x128xf32>
    %24 = arith.maximumf %22, %23 : vector<2x128xf32>
    %25 = arith.truncf %24 : vector<2x128xf32> to vector<2x128xbf16>
    %c0_18 = arith.constant 0 : index
    %c0_19 = arith.constant 0 : index
    %26 = vector.load %arg8[%c0_18, %c0_19] : memref<128x128xbf16, #tpu.memory_space<vmem>>, vector<128x128xbf16>
    %cst_20 = arith.constant dense<0.000000e+00> : vector<2x128xf32>
    %27 = tpu.matmul %25, %26, %cst_20 {dimension_numbers = #tpu.dot_dimension_numbers<[1], [0], [0], [1], [0, 0, 1, 1], [], []>} : vector<2x128xbf16>, vector<128x128xbf16>, vector<2x128xf32> -> vector<2x128xf32>
    %c0_21 = arith.constant 0 : index
    %c0_22 = arith.constant 0 : index
    %28 = vector.load %arg9[%c0_21, %c0_22] : memref<1x128xf32, #tpu.memory_space<vmem>>, vector<1x128xf32>
    %29 = vector.broadcast %28 : vector<1x128xf32> to vector<2x128xf32>
    %30 = arith.addf %27, %29 : vector<2x128xf32>
    %c0_23 = arith.constant 0 : index
    %c0_24 = arith.constant 0 : index
    %31 = vector.load %arg10[%c0_23, %c0_24] : memref<2x128xf32, #tpu.memory_space<vmem>>, vector<2x128xf32>
    tpu.vector_store %arg10[%c0_23, %c0_24], %30 {strides = array<i32>} : memref<2x128xf32, #tpu.memory_space<vmem>>, vector<2x128xf32>,
    return
  }
  func.func @transform_0(%arg0: i32) -> (i32, i32) {
    %c0_i32 = arith.constant 0 : i32
    %c0_i32_0 = arith.constant 0 : i32
    return %arg0, %c0_i32 : i32, i32
  }
  func.func @transform_1(%arg0: i32) -> (i32, i32) {
    %c0_i32 = arith.constant 0 : i32
    %c0_i32_0 = arith.constant 0 : i32
    %c0_i32_1 = arith.constant 0 : i32
    return %c0_i32, %c0_i32_0 : i32, i32
  }
  func.func @transform_2(%arg0: i32) -> (i32, i32) {
    %c0_i32 = arith.constant 0 : i32
    %c0_i32_0 = arith.constant 0 : i32
    %c0_i32_1 = arith.constant 0 : i32
    return %c0_i32, %c0_i32_0 : i32, i32
  }
  func.func @transform_3(%arg0: i32) -> (i32, i32) {
    %c0_i32 = arith.constant 0 : i32
    %c0_i32_0 = arith.constant 0 : i32
    %c0_i32_1 = arith.constant 0 : i32
    return %c0_i32, %c0_i32_0 : i32, i32
  }
  func.func @transform_4(%arg0: i32) -> (i32, i32) {
    %c0_i32 = arith.constant 0 : i32
    %c0_i32_0 = arith.constant 0 : i32
    %c0_i32_1 = arith.constant 0 : i32
    return %c0_i32, %c0_i32_0 : i32, i32
  }
  func.func @transform_5(%arg0: i32) -> (i32, i32) {
    %c0_i32 = arith.constant 0 : i32
    %c0_i32_0 = arith.constant 0 : i32
    %c0_i32_1 = arith.constant 0 : i32
    return %c0_i32, %c0_i32_0 : i32, i32
  }
  func.func @transform_6(%arg0: i32) -> (i32, i32) {
    %c0_i32 = arith.constant 0 : i32
    %c0_i32_0 = arith.constant 0 : i32
    %c0_i32_1 = arith.constant 0 : i32
    return %c0_i32, %c0_i32_0 : i32, i32
  }
  func.func @transform_7(%arg0: i32) -> (i32, i32) {
    %c0_i32 = arith.constant 0 : i32
    %c0_i32_0 = arith.constant 0 : i32
    %c0_i32_1 = arith.constant 0 : i32
    return %c0_i32, %c0_i32_0 : i32, i32
  }
  func.func @transform_8(%arg0: i32) -> (i32, i32) {
    %c0_i32 = arith.constant 0 : i32
    %c0_i32_0 = arith.constant 0 : i32
    %c0_i32_1 = arith.constant 0 : i32
    return %c0_i32, %c0_i32_0 : i32, i32
  }
  func.func @transform_9(%arg0: i32) -> (i32, i32) {
    %c0_i32 = arith.constant 0 : i32
    %c0_i32_0 = arith.constant 0 : i32
    return %arg0, %c0_i32 : i32, i32
  }
}

</mosaic_0001>

<llo_original>
// kernel: tpu_custom_call.1
$region0: #{tpu_custom_call.1}
  #allocation0 [shape = 'u32[]', space=smem, size = 0x4, offset = 0x4, fixed_abs, tag = 'smem constant byte address 0x4 - core index']
  #allocation1 [shape = 'u32[144,128]{1,0:T(1,128)}', space=vmem, size = 0x12000, scoped, tag = 'internal scratch']
  %s0 = inlined_call_operand.hbm [shape: f32[2,784], index: 0, kind: input, shape index: {}]
  %s1 = inlined_call_operand.hbm [shape: bf16[784,128], index: 1, kind: input, shape index: {}]
  %s2 = inlined_call_operand.vmem [shape: f32[1,128], index: 2, kind: input, shape index: {}]
  %s3 = inlined_call_operand.hbm [shape: bf16[128,128], index: 3, kind: input, shape index: {}]
  %s4 = inlined_call_operand.vmem [shape: f32[1,128], index: 4, kind: input, shape index: {}]
  %s5 = inlined_call_operand.hbm [shape: bf16[128,128], index: 5, kind: input, shape index: {}]
  %s6 = inlined_call_operand.vmem [shape: f32[1,128], index: 6, kind: input, shape index: {}]
  %s7 = inlined_call_operand.hbm [shape: bf16[128,128], index: 7, kind: input, shape index: {}]
  %s8 = inlined_call_operand.vmem [shape: f32[1,128], index: 8, kind: input, shape index: {}]
  %s9 = inlined_call_operand.hbm [shape: f32[2,128], index: 9, kind: output, shape index: {}]
  %s10 = sld [smem:[#allocation0]]
  $region66: #{tpu_custom_call.1} parent=0
    _
  %s12 = ssub.s32 1, %s10
  %s13 = scalar_select 0, %s12, %s10
  $region1: #{tpu_custom_call.1} parent=0
    #allocation2 [shape = 'u8[7168]{0}', space=vmem, size = 0x1c00, scoped, tag = 'input window, operand 0, single buffered']
    #allocation3 [shape = 's32[1]{0}', space=sflag, size = 0x4, scoped, tag = 'scoped memory for tpu_custom_call.1']
    #allocation4 [shape = 's32[1]{0}', space=sflag, size = 0x4, scoped, tag = 'scoped memory for tpu_custom_call.1']
    #allocation5 [shape = 'u8[200704]{0}', space=vmem, size = 0x31000, scoped, tag = 'input window, operand 1, single buffered']
    #allocation6 [shape = 's32[1]{0}', space=sflag, size = 0x4, scoped, tag = 'scoped memory for tpu_custom_call.1']
    #allocation7 [shape = 'u8[32768]{0}', space=vmem, size = 0x8000, scoped, tag = 'input window, operand 3, single buffered']
    #allocation8 [shape = 'u8[32768]{0}', space=vmem, size = 0x8000, scoped, tag = 'input window, operand 5, single buffered']
    #allocation9 [shape = 's32[1]{0}', space=sflag, size = 0x4, scoped, tag = 'scoped memory for tpu_custom_call.1']
    #allocation10 [shape = 'u8[32768]{0}', space=vmem, size = 0x8000, scoped, tag = 'input window, operand 7, single buffered']
    #allocation11 [shape = 'u8[1024]{0}', space=vmem, size = 0x400, scoped, tag = 'output window, operand 0, single buffered']
    %14 = vsyncpa [#allocation3], 0
    %15 = vsyncpa [#allocation6], 0
    %16 = vsyncpa [#allocation9], 0
    %17 = vsyncpa [#allocation4], 0
    // Predicated region
    $region2: #{tpu_custom_call.1} parent=1 // pred_check
      _
    $region3: #{tpu_custom_call.1} parent=1 // pred_check_branch
      %19 = sbr.rel (0) target = $region5
    $region4: #{tpu_custom_call.1} parent=1 // pred_region
      %s21 = ssub.s32 224, 224
      %22 = vsyncadd [#allocation3], %s21
      %s24 = sshll.u32 [#allocation2], 4
      %s25 = int_to_ptr.vmem [resolvable:$true] %s24
      %27 = dma.hbm_to_vmem [thread:$0]  %s0, 224, %s25, [#allocation3]
    $region5: #{tpu_custom_call.1} parent=1 // pred_fallthru
      _
    // Predicated region
    $region6: #{tpu_custom_call.1} parent=1 // pred_check
      _
    $region7: #{tpu_custom_call.1} parent=1 // pred_check_branch
      %29 = sbr.rel (0) target = $region9
    $region8: #{tpu_custom_call.1} parent=1 // pred_region
      %s31 = ssub.s32 6272, 6272
      %32 = vsyncadd [#allocation6], %s31
      %s33 = sshll.u32 [#allocation5], 4
      %s34 = int_to_ptr.vmem [resolvable:$true] %s33
      %39 = dma.hbm_to_vmem [thread:$0]  %s1, 6272, %s34, [#allocation6], 64, 64, 4
    $region9: #{tpu_custom_call.1} parent=1 // pred_fallthru
      _
    // Predicated region
    $region10: #{tpu_custom_call.1} parent=1 // pred_check
      _
    $region11: #{tpu_custom_call.1} parent=1 // pred_check_branch
      %41 = sbr.rel (0) target = $region13
    $region12: #{tpu_custom_call.1} parent=1 // pred_region
      _
    $region13: #{tpu_custom_call.1} parent=1 // pred_fallthru
      _
    // Predicated region
    $region14: #{tpu_custom_call.1} parent=1 // pred_check
      _
    $region15: #{tpu_custom_call.1} parent=1 // pred_check_branch
      %43 = sbr.rel (0) target = $region17
    $region16: #{tpu_custom_call.1} parent=1 // pred_region
      %s45 = ssub.s32 1024, 1024
      %46 = vsyncadd [#allocation6], %s45
      %s47 = sshll.u32 [#allocation7], 4
      %s48 = int_to_ptr.vmem [resolvable:$true] %s47
      %53 = dma.hbm_to_vmem [thread:$0]  %s3, 1024, %s48, [#allocation6], 64, 64, 4
    $region17: #{tpu_custom_call.1} parent=1 // pred_fallthru
      _
    // Predicated region
    $region18: #{tpu_custom_call.1} parent=1 // pred_check
      _
    $region19: #{tpu_custom_call.1} parent=1 // pred_check_branch
      %55 = sbr.rel (0) target = $region21
    $region20: #{tpu_custom_call.1} parent=1 // pred_region
      _
    $region21: #{tpu_custom_call.1} parent=1 // pred_fallthru
      _
    // Predicated region
    $region22: #{tpu_custom_call.1} parent=1 // pred_check
      _
    $region23: #{tpu_custom_call.1} parent=1 // pred_check_branch
      %57 = sbr.rel (0) target = $region25
    $region24: #{tpu_custom_call.1} parent=1 // pred_region
      %s59 = ssub.s32 1024, 1024
      %60 = vsyncadd [#allocation9], %s59
      %s61 = sshll.u32 [#allocation8], 4
      %s62 = int_to_ptr.vmem [resolvable:$true] %s61
      %67 = dma.hbm_to_vmem [thread:$0]  %s5, 1024, %s62, [#allocation9], 64, 64, 4
    $region25: #{tpu_custom_call.1} parent=1 // pred_fallthru
      _
    // Predicated region
    $region26: #{tpu_custom_call.1} parent=1 // pred_check
      _
    $region27: #{tpu_custom_call.1} parent=1 // pred_check_branch
      %69 = sbr.rel (0) target = $region29
    $region28: #{tpu_custom_call.1} parent=1 // pred_region
      _
    $region29: #{tpu_custom_call.1} parent=1 // pred_fallthru
      _
    // Predicated region
    $region30: #{tpu_custom_call.1} parent=1 // pred_check
      _
    $region31: #{tpu_custom_call.1} parent=1 // pred_check_branch
      %71 = sbr.rel (0) target = $region33
    $region32: #{tpu_custom_call.1} parent=1 // pred_region
      %s73 = ssub.s32 1024, 1024
      %74 = vsyncadd [#allocation9], %s73
      %s75 = sshll.u32 [#allocation10], 4
      %s76 = int_to_ptr.vmem [resolvable:$true] %s75
      %81 = dma.hbm_to_vmem [thread:$0]  %s7, 1024, %s76, [#allocation9], 64, 64, 4
    $region33: #{tpu_custom_call.1} parent=1 // pred_fallthru
      _
    // Predicated region
    $region34: #{tpu_custom_call.1} parent=1 // pred_check
      _
    $region35: #{tpu_custom_call.1} parent=1 // pred_check_branch
      %83 = sbr.rel (0) target = $region37
    $region36: #{tpu_custom_call.1} parent=1 // pred_region
      _
    $region37: #{tpu_custom_call.1} parent=1 // pred_fallthru
      _
    // Predicated region
    $region38: #{tpu_custom_call.1} parent=1 // pred_check
      _
    $region39: #{tpu_custom_call.1} parent=1 // pred_check_branch
      %85 = sbr.rel (0) target = $region41
    $region40: #{tpu_custom_call.1} parent=1 // pred_region
      %86 = dma.done [#allocation3], 224
    $region41: #{tpu_custom_call.1} parent=1 // pred_fallthru
      _
    // Predicated region
    $region42: #{tpu_custom_call.1} parent=1 // pred_check
      _
    $region43: #{tpu_custom_call.1} parent=1 // pred_check_branch
      %88 = sbr.rel (0) target = $region45
    $region44: #{tpu_custom_call.1} parent=1 // pred_region
      %89 = dma.done [#allocation6], 6272
    $region45: #{tpu_custom_call.1} parent=1 // pred_fallthru
      _
    // Predicated region
    $region46: #{tpu_custom_call.1} parent=1 // pred_check
      _
    $region47: #{tpu_custom_call.1} parent=1 // pred_check_branch
      %91 = sbr.rel (0) target = $region49
    $region48: #{tpu_custom_call.1} parent=1 // pred_region
      %92 = dma.done [#allocation6], 1024
    $region49: #{tpu_custom_call.1} parent=1 // pred_fallthru
      _
    // Predicated region
    $region50: #{tpu_custom_call.1} parent=1 // pred_check
      _
    $region51: #{tpu_custom_call.1} parent=1 // pred_check_branch
      %94 = sbr.rel (0) target = $region53
    $region52: #{tpu_custom_call.1} parent=1 // pred_region
      %95 = dma.done [#allocation9], 1024
    $region53: #{tpu_custom_call.1} parent=1 // pred_fallthru
      _
    // Predicated region
    $region54: #{tpu_custom_call.1} parent=1 // pred_check
      _
    $region55: #{tpu_custom_call.1} parent=1 // pred_check_branch
      %97 = sbr.rel (0) target = $region57
    $region56: #{tpu_custom_call.1} parent=1 // pred_region
      %98 = dma.done [#allocation9], 1024
    $region57: #{tpu_custom_call.1} parent=1 // pred_fallthru
      _
    %v100 = vld [vmem:[#allocation2] sm:$0xff]
    %v101 = vld [vmem:[#allocation2 + $0x8] sm:$0x3f]
    %v104 = vcombine.high %v100, %v100
    %v106 = vunpack.c.l.s4 1983009808
    %v107 = vunpack.c.0.s8 %v106
    %v108 = vlaneseq
    %v109 = vshrl.u32 %v108, 7
    %v110 = vsub.s32 %v107, %v109
    %v111 = vrot.slane %v100, %v110
    %v113 = vunpack.c.l.s4 1983009808
    %v114 = vunpack.c.0.s8 %v113
    %v115 = vlaneseq
    %v116 = vshrl.u32 %v115, 7
    %v117 = vsub.s32 %v114, %v116
    %v118 = vrot.slane %v104, %v117
    %v119 = vcombine.high %v111, %v111
    %v120 = vcombine.high %v118, %v118
    %v121 = vcombine.high %v101, %v101
    %v123 = vunpack.c.l.s4 1983009808
    %v124 = vunpack.c.0.s8 %v123
    %v125 = vlaneseq
    %v126 = vshrl.u32 %v125, 7
    %v127 = vsub.s32 %v124, %v126
    %v128 = vrot.slane %v101, %v127
    %v130 = vunpack.c.l.s4 1983009808
    %v131 = vunpack.c.0.s8 %v130
    %v132 = vlaneseq
    %v133 = vshrl.u32 %v132, 7
    %v134 = vsub.s32 %v131, %v133
    %v135 = vrot.slane %v121, %v134
    %v136 = vcombine.high %v128, %v128
    %v144 = vpack.c.bf16 %v111, %v111
    %v145 = vpack.c.bf16 %v119, %v119
    %v146 = vpack.c.bf16 %v118, %v118
    %v147 = vpack.c.bf16 %v120, %v120
    %v148 = vpack.c.bf16 %v128, %v128
    %v149 = vpack.c.bf16 %v136, %v136
    %v150 = vpack.c.bf16 %v135, %v135
    %v151 = vld [vmem:[#allocation5] sm:$0xf]
    %v152 = vld [vmem:[#allocation5 + $0x4] sm:$0xf]
    %v153 = vld [vmem:[#allocation5 + $0x8] sm:$0xf]
    %v154 = vld [vmem:[#allocation5 + $0xc] sm:$0xf]
    %v155 = vld [vmem:[#allocation5 + $0x10] sm:$0xf]
    %v156 = vld [vmem:[#allocation5 + $0x14] sm:$0xf]
    %v157 = vld [vmem:[#allocation5 + $0x18] sm:$0xf]
    %v158 = vld [vmem:[#allocation5 + $0x1c] sm:$0xf]
    %v159 = vld [vmem:[#allocation5 + $0x20] sm:$0xf]
    %v160 = vld [vmem:[#allocation5 + $0x24] sm:$0xf]
    %v161 = vld [vmem:[#allocation5 + $0x28] sm:$0xf]
    %v162 = vld [vmem:[#allocation5 + $0x2c] sm:$0xf]
    %v163 = vld [vmem:[#allocation5 + $0x30] sm:$0xf]
    %v164 = vld [vmem:[#allocation5 + $0x34] sm:$0xf]
    %v165 = vld [vmem:[#allocation5 + $0x38] sm:$0xf]
    %v166 = vld [vmem:[#allocation5 + $0x3c] sm:$0xf]
    %v167 = vld [vmem:[#allocation5 + $0x40] sm:$0xf]
    %v168 = vld [vmem:[#allocation5 + $0x44] sm:$0xf]
    %v169 = vld [vmem:[#allocation5 + $0x48] sm:$0xf]
    %v170 = vld [vmem:[#allocation5 + $0x4c] sm:$0xf]
    %v171 = vld [vmem:[#allocation5 + $0x50] sm:$0xf]
    %v172 = vld [vmem:[#allocation5 + $0x54] sm:$0xf]
    %v173 = vld [vmem:[#allocation5 + $0x58] sm:$0xf]
    %v174 = vld [vmem:[#allocation5 + $0x5c] sm:$0xf]
    %v175 = vld [vmem:[#allocation5 + $0x60] sm:$0xf]
    %v176 = vld [vmem:[#allocation5 + $0x64] sm:$0xf]
    %v177 = vld [vmem:[#allocation5 + $0x68] sm:$0xf]
    %v178 = vld [vmem:[#allocation5 + $0x6c] sm:$0xf]
    %v179 = vld [vmem:[#allocation5 + $0x70] sm:$0xf]
    %v180 = vld [vmem:[#allocation5 + $0x74] sm:$0xf]
    %v181 = vld [vmem:[#allocation5 + $0x78] sm:$0xf]
    %v182 = vld [vmem:[#allocation5 + $0x7c] sm:$0xf]
    %v183 = vld [vmem:[#allocation5 + $0x80] sm:$0xf]
    %v184 = vld [vmem:[#allocation5 + $0x84] sm:$0xf]
    %v185 = vld [vmem:[#allocation5 + $0x88] sm:$0xf]
    %v186 = vld [vmem:[#allocation5 + $0x8c] sm:$0xf]
    %v187 = vld [vmem:[#allocation5 + $0x90] sm:$0xf]
    %v188 = vld [vmem:[#allocation5 + $0x94] sm:$0xf]
    %v189 = vld [vmem:[#allocation5 + $0x98] sm:$0xf]
    %v190 = vld [vmem:[#allocation5 + $0x9c] sm:$0xf]
    %v191 = vld [vmem:[#allocation5 + $0xa0] sm:$0xf]
    %v192 = vld [vmem:[#allocation5 + $0xa4] sm:$0xf]
    %v193 = vld [vmem:[#allocation5 + $0xa8] sm:$0xf]
    %v194 = vld [vmem:[#allocation5 + $0xac] sm:$0xf]
    %v195 = vld [vmem:[#allocation5 + $0xb0] sm:$0xf]
    %v196 = vld [vmem:[#allocation5 + $0xb4] sm:$0xf]
    %v197 = vld [vmem:[#allocation5 + $0xb8] sm:$0xf]
    %v198 = vld [vmem:[#allocation5 + $0xbc] sm:$0xf]
    %v199 = vld [vmem:[#allocation5 + $0xc0] sm:$0xf]
    %v200 = vld [vmem:[#allocation5 + $0xc4] sm:$0xf]
    %v201 = vld [vmem:[#allocation5 + $0xc8] sm:$0xf]
    %v202 = vld [vmem:[#allocation5 + $0xcc] sm:$0xf]
    %v203 = vld [vmem:[#allocation5 + $0xd0] sm:$0xf]
    %v204 = vld [vmem:[#allocation5 + $0xd4] sm:$0xf]
    %v205 = vld [vmem:[#allocation5 + $0xd8] sm:$0xf]
    %v206 = vld [vmem:[#allocation5 + $0xdc] sm:$0xf]
    %v207 = vld [vmem:[#allocation5 + $0xe0] sm:$0xf]
    %v208 = vld [vmem:[#allocation5 + $0xe4] sm:$0xf]
    %v209 = vld [vmem:[#allocation5 + $0xe8] sm:$0xf]
    %v210 = vld [vmem:[#allocation5 + $0xec] sm:$0xf]
    %v211 = vld [vmem:[#allocation5 + $0xf0] sm:$0xf]
    %v212 = vld [vmem:[#allocation5 + $0xf4] sm:$0xf]
    %v213 = vld [vmem:[#allocation5 + $0xf8] sm:$0xf]
    %v214 = vld [vmem:[#allocation5 + $0xfc] sm:$0xf]
    %v215 = vld [vmem:[#allocation5 + $0x100] sm:$0xf]
    %v216 = vld [vmem:[#allocation5 + $0x104] sm:$0xf]
    %v217 = vld [vmem:[#allocation5 + $0x108] sm:$0xf]
    %v218 = vld [vmem:[#allocation5 + $0x10c] sm:$0xf]
    %v219 = vld [vmem:[#allocation5 + $0x110] sm:$0xf]
    %v220 = vld [vmem:[#allocation5 + $0x114] sm:$0xf]
    %v221 = vld [vmem:[#allocation5 + $0x118] sm:$0xf]
    %v222 = vld [vmem:[#allocation5 + $0x11c] sm:$0xf]
    %v223 = vld [vmem:[#allocation5 + $0x120] sm:$0xf]
    %v224 = vld [vmem:[#allocation5 + $0x124] sm:$0xf]
    %v225 = vld [vmem:[#allocation5 + $0x128] sm:$0xf]
    %v226 = vld [vmem:[#allocation5 + $0x12c] sm:$0xf]
    %v227 = vld [vmem:[#allocation5 + $0x130] sm:$0xf]
    %v228 = vld [vmem:[#allocation5 + $0x134] sm:$0xf]
    %v229 = vld [vmem:[#allocation5 + $0x138] sm:$0xf]
    %v230 = vld [vmem:[#allocation5 + $0x13c] sm:$0xf]
    %v231 = vld [vmem:[#allocation5 + $0x140] sm:$0xf]
    %v232 = vld [vmem:[#allocation5 + $0x144] sm:$0xf]
    %v233 = vld [vmem:[#allocation5 + $0x148] sm:$0xf]
    %v234 = vld [vmem:[#allocation5 + $0x14c] sm:$0xf]
    %v235 = vld [vmem:[#allocation5 + $0x150] sm:$0xf]
    %v236 = vld [vmem:[#allocation5 + $0x154] sm:$0xf]
    %v237 = vld [vmem:[#allocation5 + $0x158] sm:$0xf]
    %v238 = vld [vmem:[#allocation5 + $0x15c] sm:$0xf]
    %v239 = vld [vmem:[#allocation5 + $0x160] sm:$0xf]
    %v240 = vld [vmem:[#allocation5 + $0x164] sm:$0xf]
    %v241 = vld [vmem:[#allocation5 + $0x168] sm:$0xf]
    %v242 = vld [vmem:[#allocation5 + $0x16c] sm:$0xf]
    %v243 = vld [vmem:[#allocation5 + $0x170] sm:$0xf]
    %v244 = vld [vmem:[#allocation5 + $0x174] sm:$0xf]
    %v245 = vld [vmem:[#allocation5 + $0x178] sm:$0xf]
    %v246 = vld [vmem:[#allocation5 + $0x17c] sm:$0xf]
    %v247 = vld [vmem:[#allocation5 + $0x180] sm:$0xf]
    %v248 = vld [vmem:[#allocation5 + $0x184] sm:$0xf]
    %v249 = vld [vmem:[%s2] sm:$0x1]
    %v251 = vlaneseq
    %v252 = vshrl.u32 %v251, 7
    %v253 = vsub.s32 0, %v252
    %v254 = vrot.slane %v249, %v253
    %v354 = vunpack.c.l.b16 %v151
    %v355 = vunpack.c.l.b16 %v152
    %v356 = vunpack.c.l.b16 %v153
    %v357 = vunpack.c.l.b16 %v154
    %v358 = vunpack.c.l.b16 %v155
    %v359 = vunpack.c.l.b16 %v156
    %v360 = vunpack.c.l.b16 %v157
    %v361 = vunpack.c.l.b16 %v158
    %v362 = vunpack.c.l.b16 %v159
    %v363 = vunpack.c.l.b16 %v160
    %v364 = vunpack.c.l.b16 %v161
    %v365 = vunpack.c.l.b16 %v162
    %v366 = vunpack.c.l.b16 %v163
    %v367 = vunpack.c.l.b16 %v164
    %v368 = vunpack.c.l.b16 %v165
    %v369 = vunpack.c.l.b16 %v166
    %v370 = vunpack.c.l.b16 %v167
    %v371 = vunpack.c.l.b16 %v168
    %v372 = vunpack.c.l.b16 %v169
    %v373 = vunpack.c.l.b16 %v170
    %v374 = vunpack.c.l.b16 %v171
    %v375 = vunpack.c.l.b16 %v172
    %v376 = vunpack.c.l.b16 %v173
    %v377 = vunpack.c.l.b16 %v174
    %v378 = vunpack.c.l.b16 %v175
    %v379 = vunpack.c.l.b16 %v176
    %v380 = vunpack.c.l.b16 %v177
    %v381 = vunpack.c.l.b16 %v178
    %v382 = vunpack.c.l.b16 %v179
    %v383 = vunpack.c.l.b16 %v180
    %v384 = vunpack.c.l.b16 %v181
    %v385 = vunpack.c.l.b16 %v182
    %v386 = vunpack.c.l.b16 %v183
    %v387 = vunpack.c.l.b16 %v184
    %v388 = vunpack.c.l.b16 %v185
    %v389 = vunpack.c.l.b16 %v186
    %v390 = vunpack.c.l.b16 %v187
    %v391 = vunpack.c.l.b16 %v188
    %v392 = vunpack.c.l.b16 %v189
    %v393 = vunpack.c.l.b16 %v190
    %v394 = vunpack.c.l.b16 %v191
    %v395 = vunpack.c.l.b16 %v192
    %v396 = vunpack.c.l.b16 %v193
    %v397 = vunpack.c.l.b16 %v194
    %v398 = vunpack.c.l.b16 %v195
    %v399 = vunpack.c.l.b16 %v196
    %v400 = vunpack.c.l.b16 %v197
    %v401 = vunpack.c.l.b16 %v198
    %v402 = vunpack.c.l.b16 %v199
    %v403 = vunpack.c.l.b16 %v200
    %v404 = vunpack.c.l.b16 %v201
    %v405 = vunpack.c.l.b16 %v202
    %v406 = vunpack.c.l.b16 %v203
    %v407 = vunpack.c.l.b16 %v204
    %v408 = vunpack.c.l.b16 %v205
    %v409 = vunpack.c.l.b16 %v206
    %v410 = vunpack.c.l.b16 %v207
    %v411 = vunpack.c.l.b16 %v208
    %v412 = vunpack.c.l.b16 %v209
    %v413 = vunpack.c.l.b16 %v210
    %v414 = vunpack.c.l.b16 %v211
    %v415 = vunpack.c.l.b16 %v212
    %v416 = vunpack.c.l.b16 %v213
    %v417 = vunpack.c.l.b16 %v214
    %v418 = vunpack.c.l.b16 %v215
    %v419 = vunpack.c.l.b16 %v216
    %v420 = vunpack.c.l.b16 %v217
    %v421 = vunpack.c.l.b16 %v218
    %v422 = vunpack.c.l.b16 %v219
    %v423 = vunpack.c.l.b16 %v220
    %v424 = vunpack.c.l.b16 %v221
    %v425 = vunpack.c.l.b16 %v222
    %v426 = vunpack.c.l.b16 %v223
    %v427 = vunpack.c.l.b16 %v224
    %v428 = vunpack.c.l.b16 %v225
    %v429 = vunpack.c.l.b16 %v226
    %v430 = vunpack.c.l.b16 %v227
    %v431 = vunpack.c.l.b16 %v228
    %v432 = vunpack.c.l.b16 %v229
    %v433 = vunpack.c.l.b16 %v230
    %v434 = vunpack.c.l.b16 %v231
    %v435 = vunpack.c.l.b16 %v232
    %v436 = vunpack.c.l.b16 %v233
    %v437 = vunpack.c.l.b16 %v234
    %v438 = vunpack.c.l.b16 %v235
    %v439 = vunpack.c.l.b16 %v236
    %v440 = vunpack.c.l.b16 %v237
    %v441 = vunpack.c.l.b16 %v238
    %v442 = vunpack.c.l.b16 %v239
    %v443 = vunpack.c.l.b16 %v240
    %v444 = vunpack.c.l.b16 %v241
    %v445 = vunpack.c.l.b16 %v242
    %v446 = vunpack.c.l.b16 %v243
    %v447 = vunpack.c.l.b16 %v244
    %v448 = vunpack.c.l.b16 %v245
    %v449 = vunpack.c.l.b16 %v246
    %v450 = vunpack.c.l.b16 %v247
    %v451 = vunpack.c.l.b16 %v248
    %v452 = vpack.c.b16 %v355, %v354
    %v453 = vpack.c.b16 %v357, %v356
    %v454 = vpack.c.b16 %v359, %v358
    %v455 = vpack.c.b16 %v361, %v360
    %v456 = vpack.c.b16 %v363, %v362
    %v457 = vpack.c.b16 %v365, %v364
    %v458 = vpack.c.b16 %v367, %v366
    %v459 = vpack.c.b16 %v369, %v368
    %v460 = vpack.c.b16 %v371, %v370
    %v461 = vpack.c.b16 %v373, %v372
    %v462 = vpack.c.b16 %v375, %v374
    %v463 = vpack.c.b16 %v377, %v376
    %v464 = vpack.c.b16 %v379, %v378
    %v465 = vpack.c.b16 %v381, %v380
    %v466 = vpack.c.b16 %v383, %v382
    %v467 = vpack.c.b16 %v385, %v384
    %v468 = vpack.c.b16 %v387, %v386
    %v469 = vpack.c.b16 %v389, %v388
    %v470 = vpack.c.b16 %v391, %v390
    %v471 = vpack.c.b16 %v393, %v392
    %v472 = vpack.c.b16 %v395, %v394
    %v473 = vpack.c.b16 %v397, %v396
    %v474 = vpack.c.b16 %v399, %v398
    %v475 = vpack.c.b16 %v401, %v400
    %v476 = vpack.c.b16 %v403, %v402
    %v477 = vpack.c.b16 %v405, %v404
    %v478 = vpack.c.b16 %v407, %v406
    %v479 = vpack.c.b16 %v409, %v408
    %v480 = vpack.c.b16 %v411, %v410
    %v481 = vpack.c.b16 %v413, %v412
    %v482 = vpack.c.b16 %v415, %v414
    %v483 = vpack.c.b16 %v417, %v416
    %v484 = vpack.c.b16 %v419, %v418
    %v485 = vpack.c.b16 %v421, %v420
    %v486 = vpack.c.b16 %v423, %v422
    %v487 = vpack.c.b16 %v425, %v424
    %v488 = vpack.c.b16 %v427, %v426
    %v489 = vpack.c.b16 %v429, %v428
    %v490 = vpack.c.b16 %v431, %v430
    %v491 = vpack.c.b16 %v433, %v432
    %v492 = vpack.c.b16 %v435, %v434
    %v493 = vpack.c.b16 %v437, %v436
    %v494 = vpack.c.b16 %v439, %v438
    %v495 = vpack.c.b16 %v441, %v440
    %v496 = vpack.c.b16 %v443, %v442
    %v497 = vpack.c.b16 %v445, %v444
    %v498 = vpack.c.b16 %v447, %v446
    %v499 = vpack.c.b16 %v449, %v448
    %v500 = vpack.c.b16 %v451, %v450
    %vm550 = vcmask 130048
    %v552 = vsel %vm550, %v150, 0
    %554 = vmatprep.subr.bf16.mxu0 0
    %555 = vmatpush1.bf16.msra.mxu0 %v459
    %556 = vmatprep.subr.bf16.mxu0 0
    %557 = vmatpush1.bf16.msra.mxu0 %v458
    %558 = vmatprep.subr.bf16.mxu0 0
    %559 = vmatpush1.bf16.msra.mxu0 %v457
    %560 = vmatprep.subr.bf16.mxu0 0
    %561 = vmatpush1.bf16.msra.mxu0 %v456
    %562 = vmatprep.subr.bf16.mxu0 0
    %563 = vmatpush1.bf16.msra.mxu0 %v455
    %564 = vmatprep.subr.bf16.mxu0 0
    %565 = vmatpush1.bf16.msra.mxu0 %v454
    %566 = vmatprep.subr.bf16.mxu0 0
    %567 = vmatpush1.bf16.msra.mxu0 %v453
    %568 = vmatprep.subr.bf16.mxu0 0
    %569 = vmatpush1.bf16.msra.mxu0 %v452
    %570 = vmatprep.subr.bf16.mxu0 0
    %571 = vmatpush2.bf16.msra.mxu0 %v467
    %572 = vmatprep.subr.bf16.mxu0 0
    %573 = vmatpush2.bf16.msra.mxu0 %v466
    %574 = vmatprep.subr.bf16.mxu0 0
    %575 = vmatpush2.bf16.msra.mxu0 %v465
    %576 = vmatprep.subr.bf16.mxu0 0
    %577 = vmatpush2.bf16.msra.mxu0 %v464
    %578 = vmatprep.subr.bf16.mxu0 0
    %579 = vmatpush2.bf16.msra.mxu0 %v463
    %580 = vmatprep.subr.bf16.mxu0 0
    %581 = vmatpush2.bf16.msra.mxu0 %v462
    %582 = vmatprep.subr.bf16.mxu0 0
    %583 = vmatpush2.bf16.msra.mxu0 %v461
    %584 = vmatprep.subr.bf16.mxu0 0
    %585 = vmatpush2.bf16.msra.mxu0 %v460
    %586 = vmatprep.mubr.bf16.mxu0 %v145
    %587 = vmatmul.mubr.bf16.gmra.mxu0 %v144
    %v588 = vpop.f32.mrf.mxu0
    %v589 = vadd.f32 %v254, %v588
    %v590 = vpop.f32.mrf.mxu0
    %v591 = vpop.f32.mrf.mxu0
    %v592 = vpop.f32.mrf.mxu0
    %593 = vdwg.mxu0
    %594 = vmatprep.subr.bf16.mxu0 0
    %595 = vmatpush1.bf16.msra.mxu0 %v475
    %596 = vmatprep.subr.bf16.mxu0 0
    %597 = vmatpush1.bf16.msra.mxu0 %v474
    %598 = vmatprep.subr.bf16.mxu0 0
    %599 = vmatpush1.bf16.msra.mxu0 %v473
    %600 = vmatprep.subr.bf16.mxu0 0
    %601 = vmatpush1.bf16.msra.mxu0 %v472
    %602 = vmatprep.subr.bf16.mxu0 0
    %603 = vmatpush1.bf16.msra.mxu0 %v471
    %604 = vmatprep.subr.bf16.mxu0 0
    %605 = vmatpush1.bf16.msra.mxu0 %v470
    %606 = vmatprep.subr.bf16.mxu0 0
    %607 = vmatpush1.bf16.msra.mxu0 %v469
    %608 = vmatprep.subr.bf16.mxu0 0
    %609 = vmatpush1.bf16.msra.mxu0 %v468
    %610 = vmatprep.subr.bf16.mxu0 0
    %611 = vmatpush2.bf16.msra.mxu0 %v483
    %612 = vmatprep.subr.bf16.mxu0 0
    %613 = vmatpush2.bf16.msra.mxu0 %v482
    %614 = vmatprep.subr.bf16.mxu0 0
    %615 = vmatpush2.bf16.msra.mxu0 %v481
    %616 = vmatprep.subr.bf16.mxu0 0
    %617 = vmatpush2.bf16.msra.mxu0 %v480
    %618 = vmatprep.subr.bf16.mxu0 0
    %619 = vmatpush2.bf16.msra.mxu0 %v479
    %620 = vmatprep.subr.bf16.mxu0 0
    %621 = vmatpush2.bf16.msra.mxu0 %v478
    %622 = vmatprep.subr.bf16.mxu0 0
    %623 = vmatpush2.bf16.msra.mxu0 %v477
    %624 = vmatprep.subr.bf16.mxu0 0
    %625 = vmatpush2.bf16.msra.mxu0 %v476
    %626 = vmatprep.mubr.bf16.mxu0 %v147
    %627 = vmatmul.mubr.bf16.gmra.mxu0 %v146
    %v628 = vpop.f32.mrf.mxu0
    %v629 = vadd.f32 %v589, %v628
    %v630 = vpop.f32.mrf.mxu0
    %v631 = vpop.f32.mrf.mxu0
    %v632 = vpop.f32.mrf.mxu0
    %633 = vdwg.mxu0
    %634 = vmatprep.subr.bf16.mxu0 0
    %635 = vmatpush1.bf16.msra.mxu0 %v491
    %636 = vmatprep.subr.bf16.mxu0 0
    %637 = vmatpush1.bf16.msra.mxu0 %v490
    %638 = vmatprep.subr.bf16.mxu0 0
    %639 = vmatpush1.bf16.msra.mxu0 %v489
    %640 = vmatprep.subr.bf16.mxu0 0
    %641 = vmatpush1.bf16.msra.mxu0 %v488
    %642 = vmatprep.subr.bf16.mxu0 0
    %643 = vmatpush1.bf16.msra.mxu0 %v487
    %644 = vmatprep.subr.bf16.mxu0 0
    %645 = vmatpush1.bf16.msra.mxu0 %v486
    %646 = vmatprep.subr.bf16.mxu0 0
    %647 = vmatpush1.bf16.msra.mxu0 %v485
    %648 = vmatprep.subr.bf16.mxu0 0
    %649 = vmatpush1.bf16.msra.mxu0 %v484
    %650 = vmatprep.subr.bf16.mxu0 0
    %651 = vmatpush2.bf16.msra.mxu0 %v499
    %652 = vmatprep.subr.bf16.mxu0 0
    %653 = vmatpush2.bf16.msra.mxu0 %v498
    %654 = vmatprep.subr.bf16.mxu0 0
    %655 = vmatpush2.bf16.msra.mxu0 %v497
    %656 = vmatprep.subr.bf16.mxu0 0
    %657 = vmatpush2.bf16.msra.mxu0 %v496
    %658 = vmatprep.subr.bf16.mxu0 0
    %659 = vmatpush2.bf16.msra.mxu0 %v495
    %660 = vmatprep.subr.bf16.mxu0 0
    %661 = vmatpush2.bf16.msra.mxu0 %v494
    %662 = vmatprep.subr.bf16.mxu0 0
    %663 = vmatpush2.bf16.msra.mxu0 %v493
    %664 = vmatprep.subr.bf16.mxu0 0
    %665 = vmatpush2.bf16.msra.mxu0 %v492
    %666 = vmatprep.mubr.bf16.mxu0 %v149
    %667 = vmatmul.mubr.bf16.gmra.mxu0 %v148
    %v668 = vpop.f32.mrf.mxu0
    %v669 = vadd.f32 %v629, %v668
    %v670 = vpop.f32.mrf.mxu0
    %v671 = vpop.f32.mrf.mxu0
    %v672 = vpop.f32.mrf.mxu0
    %673 = vdwg.mxu0
    %674 = vmatprep.subr.bf16.mxu0 0
    %675 = vmatpush1.bf16.msra.mxu0 0
    %676 = vmatprep.subr.bf16.mxu0 0
    %677 = vmatpush1.bf16.msra.mxu0 0
    %678 = vmatprep.subr.bf16.mxu0 0
    %679 = vmatpush1.bf16.msra.mxu0 0
    %680 = vmatprep.subr.bf16.mxu0 0
    %681 = vmatpush1.bf16.msra.mxu0 0
    %682 = vmatprep.subr.bf16.mxu0 0
    %683 = vmatpush1.bf16.msra.mxu0 0
    %684 = vmatprep.subr.bf16.mxu0 0
    %685 = vmatpush1.bf16.msra.mxu0 0
    %686 = vmatprep.subr.bf16.mxu0 0
    %687 = vmatpush1.bf16.msra.mxu0 0
    %688 = vmatprep.subr.bf16.mxu0 0
    %689 = vmatpush1.bf16.msra.mxu0 %v500
    %690 = vmatprep.subr.bf16.mxu0 0
    %691 = vmatpush2.bf16.msra.mxu0 0
    %692 = vmatprep.subr.bf16.mxu0 0
    %693 = vmatpush2.bf16.msra.mxu0 0
    %694 = vmatprep.subr.bf16.mxu0 0
    %695 = vmatpush2.bf16.msra.mxu0 0
    %696 = vmatprep.subr.bf16.mxu0 0
    %697 = vmatpush2.bf16.msra.mxu0 0
    %698 = vmatprep.subr.bf16.mxu0 0
    %699 = vmatpush2.bf16.msra.mxu0 0
    %700 = vmatprep.subr.bf16.mxu0 0
    %701 = vmatpush2.bf16.msra.mxu0 0
    %702 = vmatprep.subr.bf16.mxu0 0
    %703 = vmatpush2.bf16.msra.mxu0 0
    %704 = vmatprep.subr.bf16.mxu0 0
    %705 = vmatpush2.bf16.msra.mxu0 0
    %706 = vmatprep.mubr.bf16.mxu0 0
    %707 = vmatmul.mubr.bf16.gmra.mxu0 %v552
    %v708 = vpop.f32.mrf.mxu0
    %v709 = vadd.f32 %v669, %v708
    %v710 = vpop.f32.mrf.mxu0
    %v711 = vpop.f32.mrf.mxu0
    %v712 = vpop.f32.mrf.mxu0
    %713 = vdwg.mxu0
    %v714 = vmax.f32 %v709, 0.0
    %v715 = vpack.c.bf16 %v714, %v714
    %v716 = vld [vmem:[#allocation7] sm:$0xf]
    %v717 = vld [vmem:[#allocation7 + $0x4] sm:$0xf]
    %v718 = vld [vmem:[#allocation7 + $0x8] sm:$0xf]
    %v719 = vld [vmem:[#allocation7 + $0xc] sm:$0xf]
    %v720 = vld [vmem:[#allocation7 + $0x10] sm:$0xf]
    %v721 = vld [vmem:[#allocation7 + $0x14] sm:$0xf]
    %v722 = vld [vmem:[#allocation7 + $0x18] sm:$0xf]
    %v723 = vld [vmem:[#allocation7 + $0x1c] sm:$0xf]
    %v724 = vld [vmem:[#allocation7 + $0x20] sm:$0xf]
    %v725 = vld [vmem:[#allocation7 + $0x24] sm:$0xf]
    %v726 = vld [vmem:[#allocation7 + $0x28] sm:$0xf]
    %v727 = vld [vmem:[#allocation7 + $0x2c] sm:$0xf]
    %v728 = vld [vmem:[#allocation7 + $0x30] sm:$0xf]
    %v729 = vld [vmem:[#allocation7 + $0x34] sm:$0xf]
    %v730 = vld [vmem:[#allocation7 + $0x38] sm:$0xf]
    %v731 = vld [vmem:[#allocation7 + $0x3c] sm:$0xf]
    %v732 = vld [vmem:[%s4] sm:$0x1]
    %v734 = vlaneseq
    %v735 = vshrl.u32 %v734, 7
    %v736 = vsub.s32 0, %v735
    %v737 = vrot.slane %v732, %v736
    %v755 = vunpack.c.l.b16 %v716
    %v756 = vunpack.c.l.b16 %v717
    %v757 = vunpack.c.l.b16 %v718
    %v758 = vunpack.c.l.b16 %v719
    %v759 = vunpack.c.l.b16 %v720
    %v760 = vunpack.c.l.b16 %v721
    %v761 = vunpack.c.l.b16 %v722
    %v762 = vunpack.c.l.b16 %v723
    %v763 = vunpack.c.l.b16 %v724
    %v764 = vunpack.c.l.b16 %v725
    %v765 = vunpack.c.l.b16 %v726
    %v766 = vunpack.c.l.b16 %v727
    %v767 = vunpack.c.l.b16 %v728
    %v768 = vunpack.c.l.b16 %v729
    %v769 = vunpack.c.l.b16 %v730
    %v770 = vunpack.c.l.b16 %v731
    %v771 = vpack.c.b16 %v756, %v755
    %v772 = vpack.c.b16 %v758, %v757
    %v773 = vpack.c.b16 %v760, %v759
    %v774 = vpack.c.b16 %v762, %v761
    %v775 = vpack.c.b16 %v764, %v763
    %v776 = vpack.c.b16 %v766, %v765
    %v777 = vpack.c.b16 %v768, %v767
    %v778 = vpack.c.b16 %v770, %v769
    %787 = vmatprep.subr.bf16.mxu0 0
    %788 = vmatpush1.bf16.msra.mxu0 %v778
    %789 = vmatprep.subr.bf16.mxu0 0
    %790 = vmatpush1.bf16.msra.mxu0 %v777
    %791 = vmatprep.subr.bf16.mxu0 0
    %792 = vmatpush1.bf16.msra.mxu0 %v776
    %793 = vmatprep.subr.bf16.mxu0 0
    %794 = vmatpush1.bf16.msra.mxu0 %v775
    %795 = vmatprep.subr.bf16.mxu0 0
    %796 = vmatpush1.bf16.msra.mxu0 %v774
    %797 = vmatprep.subr.bf16.mxu0 0
    %798 = vmatpush1.bf16.msra.mxu0 %v773
    %799 = vmatprep.subr.bf16.mxu0 0
    %800 = vmatpush1.bf16.msra.mxu0 %v772
    %801 = vmatprep.subr.bf16.mxu0 0
    %802 = vmatpush1.bf16.msra.mxu0 %v771
    %803 = vmatprep.subr.bf16.mxu0 0
    %804 = vmatpush2.bf16.msra.mxu0 0
    %805 = vmatprep.subr.bf16.mxu0 0
    %806 = vmatpush2.bf16.msra.mxu0 0
    %807 = vmatprep.subr.bf16.mxu0 0
    %808 = vmatpush2.bf16.msra.mxu0 0
    %809 = vmatprep.subr.bf16.mxu0 0
    %810 = vmatpush2.bf16.msra.mxu0 0
    %811 = vmatprep.subr.bf16.mxu0 0
    %812 = vmatpush2.bf16.msra.mxu0 0
    %813 = vmatprep.subr.bf16.mxu0 0
    %814 = vmatpush2.bf16.msra.mxu0 0
    %815 = vmatprep.subr.bf16.mxu0 0
    %816 = vmatpush2.bf16.msra.mxu0 0
    %817 = vmatprep.subr.bf16.mxu0 0
    %818 = vmatpush2.bf16.msra.mxu0 0
    %819 = vmatprep.mubr.bf16.mxu0 0
    %820 = vmatmul.mubr.bf16.gmra.mxu0 %v715
    %v821 = vpop.f32.mrf.mxu0
    %v822 = vadd.f32 %v737, %v821
    %v823 = vpop.f32.mrf.mxu0
    %v824 = vpop.f32.mrf.mxu0
    %v825 = vpop.f32.mrf.mxu0
    %826 = vdwg.mxu0
    %v827 = vmax.f32 %v822, 0.0
    %v828 = vpack.c.bf16 %v827, %v827
    %v829 = vld [vmem:[#allocation8] sm:$0xf]
    %v830 = vld [vmem:[#allocation8 + $0x4] sm:$0xf]
    %v831 = vld [vmem:[#allocation8 + $0x8] sm:$0xf]
    %v832 = vld [vmem:[#allocation8 + $0xc] sm:$0xf]
    %v833 = vld [vmem:[#allocation8 + $0x10] sm:$0xf]
    %v834 = vld [vmem:[#allocation8 + $0x14] sm:$0xf]
    %v835 = vld [vmem:[#allocation8 + $0x18] sm:$0xf]
    %v836 = vld [vmem:[#allocation8 + $0x1c] sm:$0xf]
    %v837 = vld [vmem:[#allocation8 + $0x20] sm:$0xf]
    %v838 = vld [vmem:[#allocation8 + $0x24] sm:$0xf]
    %v839 = vld [vmem:[#allocation8 + $0x28] sm:$0xf]
    %v840 = vld [vmem:[#allocation8 + $0x2c] sm:$0xf]
    %v841 = vld [vmem:[#allocation8 + $0x30] sm:$0xf]
    %v842 = vld [vmem:[#allocation8 + $0x34] sm:$0xf]
    %v843 = vld [vmem:[#allocation8 + $0x38] sm:$0xf]
    %v844 = vld [vmem:[#allocation8 + $0x3c] sm:$0xf]
    %v845 = vld [vmem:[%s6] sm:$0x1]
    %v847 = vlaneseq
    %v848 = vshrl.u32 %v847, 7
    %v849 = vsub.s32 0, %v848
    %v850 = vrot.slane %v845, %v849
    %v868 = vunpack.c.l.b16 %v829
    %v869 = vunpack.c.l.b16 %v830
    %v870 = vunpack.c.l.b16 %v831
    %v871 = vunpack.c.l.b16 %v832
    %v872 = vunpack.c.l.b16 %v833
    %v873 = vunpack.c.l.b16 %v834
    %v874 = vunpack.c.l.b16 %v835
    %v875 = vunpack.c.l.b16 %v836
    %v876 = vunpack.c.l.b16 %v837
    %v877 = vunpack.c.l.b16 %v838
    %v878 = vunpack.c.l.b16 %v839
    %v879 = vunpack.c.l.b16 %v840
    %v880 = vunpack.c.l.b16 %v841
    %v881 = vunpack.c.l.b16 %v842
    %v882 = vunpack.c.l.b16 %v843
    %v883 = vunpack.c.l.b16 %v844
    %v884 = vpack.c.b16 %v869, %v868
    %v885 = vpack.c.b16 %v871, %v870
    %v886 = vpack.c.b16 %v873, %v872
    %v887 = vpack.c.b16 %v875, %v874
    %v888 = vpack.c.b16 %v877, %v876
    %v889 = vpack.c.b16 %v879, %v878
    %v890 = vpack.c.b16 %v881, %v880
    %v891 = vpack.c.b16 %v883, %v882
    %900 = vmatprep.subr.bf16.mxu0 0
    %901 = vmatpush1.bf16.msra.mxu0 %v891
    %902 = vmatprep.subr.bf16.mxu0 0
    %903 = vmatpush1.bf16.msra.mxu0 %v890
    %904 = vmatprep.subr.bf16.mxu0 0
    %905 = vmatpush1.bf16.msra.mxu0 %v889
    %906 = vmatprep.subr.bf16.mxu0 0
    %907 = vmatpush1.bf16.msra.mxu0 %v888
    %908 = vmatprep.subr.bf16.mxu0 0
    %909 = vmatpush1.bf16.msra.mxu0 %v887
    %910 = vmatprep.subr.bf16.mxu0 0
    %911 = vmatpush1.bf16.msra.mxu0 %v886
    %912 = vmatprep.subr.bf16.mxu0 0
    %913 = vmatpush1.bf16.msra.mxu0 %v885
    %914 = vmatprep.subr.bf16.mxu0 0
    %915 = vmatpush1.bf16.msra.mxu0 %v884
    %916 = vmatprep.subr.bf16.mxu0 0
    %917 = vmatpush2.bf16.msra.mxu0 0
    %918 = vmatprep.subr.bf16.mxu0 0
    %919 = vmatpush2.bf16.msra.mxu0 0
    %920 = vmatprep.subr.bf16.mxu0 0
    %921 = vmatpush2.bf16.msra.mxu0 0
    %922 = vmatprep.subr.bf16.mxu0 0
    %923 = vmatpush2.bf16.msra.mxu0 0
    %924 = vmatprep.subr.bf16.mxu0 0
    %925 = vmatpush2.bf16.msra.mxu0 0
    %926 = vmatprep.subr.bf16.mxu0 0
    %927 = vmatpush2.bf16.msra.mxu0 0
    %928 = vmatprep.subr.bf16.mxu0 0
    %929 = vmatpush2.bf16.msra.mxu0 0
    %930 = vmatprep.subr.bf16.mxu0 0
    %931 = vmatpush2.bf16.msra.mxu0 0
    %932 = vmatprep.mubr.bf16.mxu0 0
    %933 = vmatmul.mubr.bf16.gmra.mxu0 %v828
    %v934 = vpop.f32.mrf.mxu0
    %v935 = vadd.f32 %v850, %v934
    %v936 = vpop.f32.mrf.mxu0
    %v937 = vpop.f32.mrf.mxu0
    %v938 = vpop.f32.mrf.mxu0
    %939 = vdwg.mxu0
    %v940 = vmax.f32 %v935, 0.0
    %v941 = vpack.c.bf16 %v940, %v940
    %v942 = vld [vmem:[#allocation10] sm:$0xf]
    %v943 = vld [vmem:[#allocation10 + $0x4] sm:$0xf]
    %v944 = vld [vmem:[#allocation10 + $0x8] sm:$0xf]
    %v945 = vld [vmem:[#allocation10 + $0xc] sm:$0xf]
    %v946 = vld [vmem:[#allocation10 + $0x10] sm:$0xf]
    %v947 = vld [vmem:[#allocation10 + $0x14] sm:$0xf]
    %v948 = vld [vmem:[#allocation10 + $0x18] sm:$0xf]
    %v949 = vld [vmem:[#allocation10 + $0x1c] sm:$0xf]
    %v950 = vld [vmem:[#allocation10 + $0x20] sm:$0xf]
    %v951 = vld [vmem:[#allocation10 + $0x24] sm:$0xf]
    %v952 = vld [vmem:[#allocation10 + $0x28] sm:$0xf]
    %v953 = vld [vmem:[#allocation10 + $0x2c] sm:$0xf]
    %v954 = vld [vmem:[#allocation10 + $0x30] sm:$0xf]
    %v955 = vld [vmem:[#allocation10 + $0x34] sm:$0xf]
    %v956 = vld [vmem:[#allocation10 + $0x38] sm:$0xf]
    %v957 = vld [vmem:[#allocation10 + $0x3c] sm:$0xf]
    %v958 = vld [vmem:[%s8] sm:$0x1]
    %v960 = vlaneseq
    %v961 = vshrl.u32 %v960, 7
    %v962 = vsub.s32 0, %v961
    %v963 = vrot.slane %v958, %v962
    %v981 = vunpack.c.l.b16 %v942
    %v982 = vunpack.c.l.b16 %v943
    %v983 = vunpack.c.l.b16 %v944
    %v984 = vunpack.c.l.b16 %v945
    %v985 = vunpack.c.l.b16 %v946
    %v986 = vunpack.c.l.b16 %v947
    %v987 = vunpack.c.l.b16 %v948
    %v988 = vunpack.c.l.b16 %v949
    %v989 = vunpack.c.l.b16 %v950
    %v990 = vunpack.c.l.b16 %v951
    %v991 = vunpack.c.l.b16 %v952
    %v992 = vunpack.c.l.b16 %v953
    %v993 = vunpack.c.l.b16 %v954
    %v994 = vunpack.c.l.b16 %v955
    %v995 = vunpack.c.l.b16 %v956
    %v996 = vunpack.c.l.b16 %v957
    %v997 = vpack.c.b16 %v982, %v981
    %v998 = vpack.c.b16 %v984, %v983
    %v999 = vpack.c.b16 %v986, %v985
    %v1000 = vpack.c.b16 %v988, %v987
    %v1001 = vpack.c.b16 %v990, %v989
    %v1002 = vpack.c.b16 %v992, %v991
    %v1003 = vpack.c.b16 %v994, %v993
    %v1004 = vpack.c.b16 %v996, %v995
    %1013 = vmatprep.subr.bf16.mxu0 0
    %1014 = vmatpush1.bf16.msra.mxu0 %v1004
    %1015 = vmatprep.subr.bf16.mxu0 0
    %1016 = vmatpush1.bf16.msra.mxu0 %v1003
    %1017 = vmatprep.subr.bf16.mxu0 0
    %1018 = vmatpush1.bf16.msra.mxu0 %v1002
    %1019 = vmatprep.subr.bf16.mxu0 0
    %1020 = vmatpush1.bf16.msra.mxu0 %v1001
    %1021 = vmatprep.subr.bf16.mxu0 0
    %1022 = vmatpush1.bf16.msra.mxu0 %v1000
    %1023 = vmatprep.subr.bf16.mxu0 0
    %1024 = vmatpush1.bf16.msra.mxu0 %v999
    %1025 = vmatprep.subr.bf16.mxu0 0
    %1026 = vmatpush1.bf16.msra.mxu0 %v998
    %1027 = vmatprep.subr.bf16.mxu0 0
    %1028 = vmatpush1.bf16.msra.mxu0 %v997
    %1029 = vmatprep.subr.bf16.mxu0 0
    %1030 = vmatpush2.bf16.msra.mxu0 0
    %1031 = vmatprep.subr.bf16.mxu0 0
    %1032 = vmatpush2.bf16.msra.mxu0 0
    %1033 = vmatprep.subr.bf16.mxu0 0
    %1034 = vmatpush2.bf16.msra.mxu0 0
    %1035 = vmatprep.subr.bf16.mxu0 0
    %1036 = vmatpush2.bf16.msra.mxu0 0
    %1037 = vmatprep.subr.bf16.mxu0 0
    %1038 = vmatpush2.bf16.msra.mxu0 0
    %1039 = vmatprep.subr.bf16.mxu0 0
    %1040 = vmatpush2.bf16.msra.mxu0 0
    %1041 = vmatprep.subr.bf16.mxu0 0
    %1042 = vmatpush2.bf16.msra.mxu0 0
    %1043 = vmatprep.subr.bf16.mxu0 0
    %1044 = vmatpush2.bf16.msra.mxu0 0
    %1045 = vmatprep.mubr.bf16.mxu0 0
    %1046 = vmatmul.mubr.bf16.gmra.mxu0 %v941
    %v1047 = vpop.f32.mrf.mxu0
    %v1048 = vadd.f32 %v963, %v1047
    %v1049 = vpop.f32.mrf.mxu0
    %v1050 = vpop.f32.mrf.mxu0
    %v1051 = vpop.f32.mrf.mxu0
    %1052 = vdwg.mxu0
    %1053 = vst [vmem:[#allocation11] sm:$0x3] %v1048
    // Predicated region
    $region58: #{tpu_custom_call.1} parent=1 // pred_check
      _
    $region59: #{tpu_custom_call.1} parent=1 // pred_check_branch
      %1055 = sbr.rel (0) target = $region61
    $region60: #{tpu_custom_call.1} parent=1 // pred_region
      %s1057 = ssub.s32 32, 32
      %1058 = vsyncadd [#allocation4], %s1057
      %s1060 = sshll.u32 [#allocation11], 4
      %s1061 = int_to_ptr.vmem [resolvable:$true] %s1060
      %1063 = dma.vmem_to_hbm [thread:$0]  %s1061, 32, %s9, [#allocation4]
    $region61: #{tpu_custom_call.1} parent=1 // pred_fallthru
      _
    // Predicated region
    $region62: #{tpu_custom_call.1} parent=1 // pred_check
      _
    $region63: #{tpu_custom_call.1} parent=1 // pred_check_branch
      %1065 = sbr.rel (0) target = $region65
    $region64: #{tpu_custom_call.1} parent=1 // pred_region
      %1066 = dma.done [#allocation4], 32
    $region65: #{tpu_custom_call.1} parent=1 // pred_fallthru
      _
    %1067 = vsyncpa [#allocation3], 1
    %1068 = vsyncpa [#allocation6], 1
    %1069 = vsyncpa [#allocation9], 1
    %1070 = vsyncpa [#allocation4], 1

</llo_original>
